<compile_context>
chip_gen: v6e
topology: v6e:2x2x1
jax: 0.10.0
libtpu: 0.0.40
codegen_flags: <defaults>
</compile_context>

<pallas_src>
import functools
import math

import numpy as np
import jax
import jax.numpy as jnp
from jax.experimental import pallas as pl
from jax.experimental.pallas import tpu as pltpu


# ----------------------------- Pallas kernel --------------------------------

def _conv_relu_pool_kernel(x_ref, bmat_ref, bias_ref, o_ref, a_ref, p_ref, *,
                           ksize, downsample):
    """Fused valid-conv + bias + ReLU + (optional) 2x2/2 max-pool, one image.

    x_ref   : (1, Cin, H, W)             NCHW input block (no wrapper transpose)
    bmat_ref: (nb, Cin*k*W, Cout*outW)   banded (Toeplitz-over-W) weight matrices
                                         nb=2 (even/odd pool column) if downsample
    bias_ref: (1, Cout*outW)             bias pre-tiled to the output column order
    o_ref   : (1, Cout, outH, outW)      NCHW output block
    a_ref   : (Ho, Cin*k*W)   f32 VMEM   per-output-row patch matrix
    p_ref   : (Ho, Cout*outW) f32 VMEM   staging buffer for the H-direction pool
    """
    _, cin, H, W = x_ref.shape
    Ho = H - ksize + 1

    # ---- build the patch matrix: 20 small slab copies (im2col over kh, ci) ----
    # a_ref[ho, (ci*k + kh)*W + w] = x[ci, ho + kh, w]
    for ci in range(cin):
        for kh in range(ksize):
            c0 = (ci * ksize + kh) * W
            a_ref[:, c0:c0 + W] = x_ref[0, ci, kh:kh + Ho, :].astype(jnp.float32)

    a = a_ref[...]

    # ---- conv taps + kw contraction as one (or two) MXU matmuls ----
    z = jnp.dot(a, bmat_ref[0], preferred_element_type=jnp.float32)
    if downsample:
        # second band matrix = odd output column of each pool pair; this max is
        # the W-direction of the 2x2 pool (ReLU/bias commute with max).
        z = jnp.maximum(z, jnp.dot(a, bmat_ref[1],
                                   preferred_element_type=jnp.float32))

    z = jnp.maximum(z + bias_ref[...], 0.0)           # bias + ReLU (VPU)

    if downsample:
        # H-direction of the pool: pair rows (2i, 2i+1) with sublane-strided loads.
        hp = Ho // 2
        p_ref[...] = z
        z = jnp.maximum(p_ref[pl.ds(0, hp, stride=2), :],
                        p_ref[pl.ds(1, hp, stride=2), :])

    # ---- emit NCHW directly: one (outH, outW) plane per output channel ----
    cout, out_w = o_ref.shape[1], o_ref.shape[3]
    for co in range(cout):
        o_ref[0, co, :, :] = z[:, co * out_w:(co + 1) * out_w].astype(o_ref.dtype)


# --------------------- host-side operand precompute --------------------------

def _build_operands(w_hwio, bias, H, W, downsample):
    """Banded weight matrices + tiled bias (tiny, numpy, built once per shape).

    B[(ci*k + kh)*W + (wo + kw), co*outW + oi] = w[kh, kw, ci, co]
    so that  (patch_matrix @ B)[ho, co*outW + oi] = conv[co, ho, wo].
    """
    w = np.asarray(w_hwio, np.float32)          # (k, k, Cin, Cout)  (HWIO)
    b = np.asarray(bias, np.float32)            # (Cout,)
    k, _, cin, cout = w.shape
    wo = W - k + 1
    if downsample:
        out_w = wo // 2
        col_groups = [range(0, 2 * out_w, 2), range(1, 2 * out_w, 2)]
    else:
        out_w = wo
        col_groups = [range(wo)]

    mats = []
    for group in col_groups:
        B = np.zeros((cin * k * W, cout * out_w), np.float32)
        for ci in range(cin):
            for kh in range(k):
                for kw in range(k):
                    for oi, wpos in enumerate(group):
                        row = (ci * k + kh) * W + wpos + kw
                        B[row, np.arange(cout) * out_w + oi] = w[kh, kw, ci, :]
        mats.append(B)
    bmat = np.stack(mats)                                     # (nb, Cin*k*W, Cout*out_w)
    bias_tiled = np.repeat(b, out_w).reshape(1, cout * out_w)  # column order (co, w)
    return jnp.asarray(bmat), jnp.asarray(bias_tiled)


# ----------------------------- Pallas wrapper --------------------------------

def conv_relu_maxpool(x_nchw, bmat, bias_tiled, ngf, ksize, downsample):
    N, cin, H, W = x_nchw.shape
    nb, kcw, wcols = bmat.shape
    Ho, Wo = H - ksize + 1, W - ksize + 1
    out_h = Ho // 2 if downsample else Ho
    out_w = Wo // 2 if downsample else Wo
    assert wcols == ngf * out_w and kcw == cin * ksize * W

    kernel = functools.partial(_conv_relu_pool_kernel, ksize=ksize,
                               downsample=downsample)
    return pl.pallas_call(
        kernel,
        out_shape=jax.ShapeDtypeStruct((N, ngf, out_h, out_w), x_nchw.dtype),
        grid=(N,),
        in_specs=[
            pl.BlockSpec((1, cin, H, W), lambda n: (n, 0, 0, 0)),
            pl.BlockSpec((nb, kcw, wcols), lambda n: (0, 0, 0)),   # resident weights
            pl.BlockSpec((1, wcols), lambda n: (0, 0)),            # resident bias
        ],
        out_specs=pl.BlockSpec((1, ngf, out_h, out_w), lambda n: (n, 0, 0, 0)),
        scratch_shapes=[
            pltpu.VMEM((Ho, kcw), jnp.float32),     # patch matrix
            pltpu.VMEM((Ho, wcols), jnp.float32),   # pool staging buffer
        ],
        compiler_params=pltpu.CompilerParams(dimension_semantics=("parallel",)),
    )(x_nchw, bmat, bias_tiled)


# ------------------------------- module port ---------------------------------

class ConvPool:
    """Pallas port of PyTorch ConvPool: Conv2d(nc, ngf, k) + ReLU + max_pool2d(2)."""

    def __init__(self, key, input_nc, input_width, input_height, ngf=6,
                 kernel_size=5, downsample=True):
        self.downsample = downsample
        if max(input_width, input_height) < kernel_size:
            # mirror the PyTorch "router kernel too large, shrink it" branch
            kernel_size = max(input_width, input_height)
            self.downsample = False
        self.kernel_size = kernel_size
        self.ngf = ngf
        self.input_nc = input_nc

        fan_in = input_nc * kernel_size * kernel_size
        bound = 1.0 / math.sqrt(fan_in)           # PyTorch Conv2d default init bound
        wk, bk = jax.random.split(key)
        # weights stored HWIO (== torch weight[co, ci, kh, kw] transposed)
        self.w = jax.random.uniform(wk, (kernel_size, kernel_size, input_nc, ngf),
                                    jnp.float32, -bound, bound)
        self.b = jax.random.uniform(bk, (ngf,), jnp.float32, -bound, bound)
        self._operands = {}                        # (H, W) -> (bmat, bias_tiled)
        self.outputshape = self.get_outputshape(input_nc, input_width, input_height)

    def get_outputshape(self, input_nc, input_width, input_height):
        # Mirrors the PyTorch module, which forwards randn(1, nc, input_width,
        # input_height): dim 2 <- input_width, dim 3 <- input_height.
        out_h = input_width - self.kernel_size + 1
        out_w = input_height - self.kernel_size + 1
        if self.downsample:
            out_h, out_w = out_h // 2, out_w // 2
        return (1, self.ngf, out_h, out_w)

    def _get_operands(self, H, W):
        key = (H, W)
        if key not in self._operands:
            self._operands[key] = _build_operands(self.w, self.b, H, W,
                                                  self.downsample)
        return self._operands[key]

    def __call__(self, x_nchw):
        bmat, bias_tiled = self._get_operands(x_nchw.shape[2], x_nchw.shape[3])
        return conv_relu_maxpool(x_nchw, bmat, bias_tiled, self.ngf,
                                 self.kernel_size, self.downsample)


# ----------------------------------- main ------------------------------------

if __name__ == "__main__":
    key = jax.random.PRNGKey(0)
    pkey, xkey = jax.random.split(key)

    N, input_nc, H, W = 2, 4, 16, 16
    model = ConvPool(pkey, input_nc, W, H, ngf=6, kernel_size=5, downsample=True)
    x = jax.random.normal(xkey, (N, input_nc, H, W), jnp.float32)

    fwd = jax.jit(model.__call__)
    y = fwd(x)
    jax.block_until_ready(y)

    # pure-JAX reference (XLA conv + reduce_window) for a correctness check
    def reference(x_nchw):
        yr = jax.lax.conv_general_dilated(
            x_nchw, model.w, (1, 1), "VALID",
            dimension_numbers=("NCHW", "HWIO", "NCHW"))
        yr = yr + model.b[None, :, None, None]
        yr = jnp.maximum(yr, 0.0)
        yr = jax.lax.reduce_window(yr, -jnp.inf, jax.lax.max,
                                   (1, 1, 2, 2), (1, 1, 2, 2), "VALID")
        return yr

    y_ref = reference(x)

    assert y.shape == (N, 6, 6, 6), y.shape                    # (N, ngf, 6, 6)
    assert y.shape[1:] == model.outputshape[1:], (y.shape, model.outputshape)
    assert bool(jnp.all(jnp.isfinite(y)))
    assert bool(jnp.allclose(y, y_ref, atol=1e-4, rtol=1e-4)), \
        float(jnp.max(jnp.abs(y - y_ref)))
    print("KERNEL_OK")
</pallas_src>

<mosaic_0001>
module attributes {stable_mosaic.version = 11 : i64} {
  func.func @_conv_relu_pool_kernel(%arg0: i32, %arg1: memref<1x4x16x16xf32, #tpu.memory_space<vmem>>, %arg2: memref<2x320x36xf32, #tpu.memory_space<vmem>>, %arg3: memref<1x36xf32, #tpu.memory_space<vmem>>, %arg4: memref<1x6x6x6xf32, #tpu.memory_space<vmem>>, %arg5: memref<12x320xf32, #tpu.memory_space<vmem>>, %arg6: memref<12x36xf32, #tpu.memory_space<vmem>>) attributes {dimension_semantics = [#tpu.dimension_semantics<parallel>], iteration_bounds = array<i64: 2>, scalar_prefetch = 0 : i64, scratch_operands = 2 : i64, tpu.core_type = #tpu.core_type<tc>, window_params = [{transform_indices = @transform_0, window_bounds = array<i64: 1, 4, 16, 16>}, {pipeline_mode = #tpu.pipeline_mode<synchronous>, transform_indices = @transform_1, window_bounds = array<i64: 2, 320, 36>}, {pipeline_mode = #tpu.pipeline_mode<synchronous>, transform_indices = @transform_2, window_bounds = array<i64: 1, 36>}, {transform_indices = @transform_3, window_bounds = array<i64: 1, 6, 6, 6>}]} {
    %c0 = arith.constant 0 : index
    %c0_0 = arith.constant 0 : index
    %c0_1 = arith.constant 0 : index
    %c0_2 = arith.constant 0 : index
    %0 = vector.load %arg1[%c0, %c0_0, %c0_1, %c0_2] : memref<1x4x16x16xf32, #tpu.memory_space<vmem>>, vector<1x1x12x16xf32>
    %1 = vector.shape_cast %0 : vector<1x1x12x16xf32> to vector<12x16xf32>
    %c0_3 = arith.constant 0 : index
    %c0_4 = arith.constant 0 : index
    %2 = vector.load %arg5[%c0_3, %c0_4] : memref<12x320xf32, #tpu.memory_space<vmem>>, vector<12x16xf32>
    tpu.vector_store %arg5[%c0_3, %c0_4], %1 {strides = array<i32>} : memref<12x320xf32, #tpu.memory_space<vmem>>, vector<12x16xf32>,
    %c0_5 = arith.constant 0 : index
    %c0_6 = arith.constant 0 : index
    %c1 = arith.constant 1 : index
    %c0_7 = arith.constant 0 : index
    %3 = vector.load %arg1[%c0_5, %c0_6, %c1, %c0_7] : memref<1x4x16x16xf32, #tpu.memory_space<vmem>>, vector<1x1x12x16xf32>
    %4 = vector.shape_cast %3 : vector<1x1x12x16xf32> to vector<12x16xf32>
    %c0_8 = arith.constant 0 : index
    %c16 = arith.constant 16 : index
    %5 = vector.load %arg5[%c0_8, %c16] : memref<12x320xf32, #tpu.memory_space<vmem>>, vector<12x16xf32>
    tpu.vector_store %arg5[%c0_8, %c16], %4 {strides = array<i32>} : memref<12x320xf32, #tpu.memory_space<vmem>>, vector<12x16xf32>,
    %c0_9 = arith.constant 0 : index
    %c0_10 = arith.constant 0 : index
    %c2 = arith.constant 2 : index
    %c0_11 = arith.constant 0 : index
    %6 = vector.load %arg1[%c0_9, %c0_10, %c2, %c0_11] : memref<1x4x16x16xf32, #tpu.memory_space<vmem>>, vector<1x1x12x16xf32>
    %7 = vector.shape_cast %6 : vector<1x1x12x16xf32> to vector<12x16xf32>
    %c0_12 = arith.constant 0 : index
    %c32 = arith.constant 32 : index
    %8 = vector.load %arg5[%c0_12, %c32] : memref<12x320xf32, #tpu.memory_space<vmem>>, vector<12x16xf32>
    tpu.vector_store %arg5[%c0_12, %c32], %7 {strides = array<i32>} : memref<12x320xf32, #tpu.memory_space<vmem>>, vector<12x16xf32>,
    %c0_13 = arith.constant 0 : index
    %c0_14 = arith.constant 0 : index
    %c3 = arith.constant 3 : index
    %c0_15 = arith.constant 0 : index
    %9 = vector.load %arg1[%c0_13, %c0_14, %c3, %c0_15] : memref<1x4x16x16xf32, #tpu.memory_space<vmem>>, vector<1x1x12x16xf32>
    %10 = vector.shape_cast %9 : vector<1x1x12x16xf32> to vector<12x16xf32>
    %c0_16 = arith.constant 0 : index
    %c48 = arith.constant 48 : index
    %11 = vector.load %arg5[%c0_16, %c48] : memref<12x320xf32, #tpu.memory_space<vmem>>, vector<12x16xf32>
    tpu.vector_store %arg5[%c0_16, %c48], %10 {strides = array<i32>} : memref<12x320xf32, #tpu.memory_space<vmem>>, vector<12x16xf32>,
    %c0_17 = arith.constant 0 : index
    %c0_18 = arith.constant 0 : index
    %c4 = arith.constant 4 : index
    %c0_19 = arith.constant 0 : index
    %12 = vector.load %arg1[%c0_17, %c0_18, %c4, %c0_19] : memref<1x4x16x16xf32, #tpu.memory_space<vmem>>, vector<1x1x12x16xf32>
    %13 = vector.shape_cast %12 : vector<1x1x12x16xf32> to vector<12x16xf32>
    %c0_20 = arith.constant 0 : index
    %c64 = arith.constant 64 : index
    %14 = vector.load %arg5[%c0_20, %c64] : memref<12x320xf32, #tpu.memory_space<vmem>>, vector<12x16xf32>
    tpu.vector_store %arg5[%c0_20, %c64], %13 {strides = array<i32>} : memref<12x320xf32, #tpu.memory_space<vmem>>, vector<12x16xf32>,
    %c0_21 = arith.constant 0 : index
    %c1_22 = arith.constant 1 : index
    %c0_23 = arith.constant 0 : index
    %c0_24 = arith.constant 0 : index
    %15 = vector.load %arg1[%c0_21, %c1_22, %c0_23, %c0_24] : memref<1x4x16x16xf32, #tpu.memory_space<vmem>>, vector<1x1x12x16xf32>
    %16 = vector.shape_cast %15 : vector<1x1x12x16xf32> to vector<12x16xf32>
    %c0_25 = arith.constant 0 : index
    %c80 = arith.constant 80 : index
    %17 = vector.load %arg5[%c0_25, %c80] : memref<12x320xf32, #tpu.memory_space<vmem>>, vector<12x16xf32>
    tpu.vector_store %arg5[%c0_25, %c80], %16 {strides = array<i32>} : memref<12x320xf32, #tpu.memory_space<vmem>>, vector<12x16xf32>,
    %c0_26 = arith.constant 0 : index
    %c1_27 = arith.constant 1 : index
    %c1_28 = arith.constant 1 : index
    %c0_29 = arith.constant 0 : index
    %18 = vector.load %arg1[%c0_26, %c1_27, %c1_28, %c0_29] : memref<1x4x16x16xf32, #tpu.memory_space<vmem>>, vector<1x1x12x16xf32>
    %19 = vector.shape_cast %18 : vector<1x1x12x16xf32> to vector<12x16xf32>
    %c0_30 = arith.constant 0 : index
    %c96 = arith.constant 96 : index
    %20 = vector.load %arg5[%c0_30, %c96] : memref<12x320xf32, #tpu.memory_space<vmem>>, vector<12x16xf32>
    tpu.vector_store %arg5[%c0_30, %c96], %19 {strides = array<i32>} : memref<12x320xf32, #tpu.memory_space<vmem>>, vector<12x16xf32>,
    %c0_31 = arith.constant 0 : index
    %c1_32 = arith.constant 1 : index
    %c2_33 = arith.constant 2 : index
    %c0_34 = arith.constant 0 : index
    %21 = vector.load %arg1[%c0_31, %c1_32, %c2_33, %c0_34] : memref<1x4x16x16xf32, #tpu.memory_space<vmem>>, vector<1x1x12x16xf32>
    %22 = vector.shape_cast %21 : vector<1x1x12x16xf32> to vector<12x16xf32>
    %c0_35 = arith.constant 0 : index
    %c112 = arith.constant 112 : index
    %23 = vector.load %arg5[%c0_35, %c112] : memref<12x320xf32, #tpu.memory_space<vmem>>, vector<12x16xf32>
    tpu.vector_store %arg5[%c0_35, %c112], %22 {strides = array<i32>} : memref<12x320xf32, #tpu.memory_space<vmem>>, vector<12x16xf32>,
    %c0_36 = arith.constant 0 : index
    %c1_37 = arith.constant 1 : index
    %c3_38 = arith.constant 3 : index
    %c0_39 = arith.constant 0 : index
    %24 = vector.load %arg1[%c0_36, %c1_37, %c3_38, %c0_39] : memref<1x4x16x16xf32, #tpu.memory_space<vmem>>, vector<1x1x12x16xf32>
    %25 = vector.shape_cast %24 : vector<1x1x12x16xf32> to vector<12x16xf32>
    %c0_40 = arith.constant 0 : index
    %c128 = arith.constant 128 : index
    %26 = vector.load %arg5[%c0_40, %c128] : memref<12x320xf32, #tpu.memory_space<vmem>>, vector<12x16xf32>
    tpu.vector_store %arg5[%c0_40, %c128], %25 {strides = array<i32>} : memref<12x320xf32, #tpu.memory_space<vmem>>, vector<12x16xf32>,
    %c0_41 = arith.constant 0 : index
    %c1_42 = arith.constant 1 : index
    %c4_43 = arith.constant 4 : index
    %c0_44 = arith.constant 0 : index
    %27 = vector.load %arg1[%c0_41, %c1_42, %c4_43, %c0_44] : memref<1x4x16x16xf32, #tpu.memory_space<vmem>>, vector<1x1x12x16xf32>
    %28 = vector.shape_cast %27 : vector<1x1x12x16xf32> to vector<12x16xf32>
    %c0_45 = arith.constant 0 : index
    %c144 = arith.constant 144 : index
    %29 = vector.load %arg5[%c0_45, %c144] : memref<12x320xf32, #tpu.memory_space<vmem>>, vector<12x16xf32>
    tpu.vector_store %arg5[%c0_45, %c144], %28 {strides = array<i32>} : memref<12x320xf32, #tpu.memory_space<vmem>>, vector<12x16xf32>,
    %c0_46 = arith.constant 0 : index
    %c2_47 = arith.constant 2 : index
    %c0_48 = arith.constant 0 : index
    %c0_49 = arith.constant 0 : index
    %30 = vector.load %arg1[%c0_46, %c2_47, %c0_48, %c0_49] : memref<1x4x16x16xf32, #tpu.memory_space<vmem>>, vector<1x1x12x16xf32>
    %31 = vector.shape_cast %30 : vector<1x1x12x16xf32> to vector<12x16xf32>
    %c0_50 = arith.constant 0 : index
    %c160 = arith.constant 160 : index
    %32 = vector.load %arg5[%c0_50, %c160] : memref<12x320xf32, #tpu.memory_space<vmem>>, vector<12x16xf32>
    tpu.vector_store %arg5[%c0_50, %c160], %31 {strides = array<i32>} : memref<12x320xf32, #tpu.memory_space<vmem>>, vector<12x16xf32>,
    %c0_51 = arith.constant 0 : index
    %c2_52 = arith.constant 2 : index
    %c1_53 = arith.constant 1 : index
    %c0_54 = arith.constant 0 : index
    %33 = vector.load %arg1[%c0_51, %c2_52, %c1_53, %c0_54] : memref<1x4x16x16xf32, #tpu.memory_space<vmem>>, vector<1x1x12x16xf32>
    %34 = vector.shape_cast %33 : vector<1x1x12x16xf32> to vector<12x16xf32>
    %c0_55 = arith.constant 0 : index
    %c176 = arith.constant 176 : index
    %35 = vector.load %arg5[%c0_55, %c176] : memref<12x320xf32, #tpu.memory_space<vmem>>, vector<12x16xf32>
    tpu.vector_store %arg5[%c0_55, %c176], %34 {strides = array<i32>} : memref<12x320xf32, #tpu.memory_space<vmem>>, vector<12x16xf32>,
    %c0_56 = arith.constant 0 : index
    %c2_57 = arith.constant 2 : index
    %c2_58 = arith.constant 2 : index
    %c0_59 = arith.constant 0 : index
    %36 = vector.load %arg1[%c0_56, %c2_57, %c2_58, %c0_59] : memref<1x4x16x16xf32, #tpu.memory_space<vmem>>, vector<1x1x12x16xf32>
    %37 = vector.shape_cast %36 : vector<1x1x12x16xf32> to vector<12x16xf32>
    %c0_60 = arith.constant 0 : index
    %c192 = arith.constant 192 : index
    %38 = vector.load %arg5[%c0_60, %c192] : memref<12x320xf32, #tpu.memory_space<vmem>>, vector<12x16xf32>
    tpu.vector_store %arg5[%c0_60, %c192], %37 {strides = array<i32>} : memref<12x320xf32, #tpu.memory_space<vmem>>, vector<12x16xf32>,
    %c0_61 = arith.constant 0 : index
    %c2_62 = arith.constant 2 : index
    %c3_63 = arith.constant 3 : index
    %c0_64 = arith.constant 0 : index
    %39 = vector.load %arg1[%c0_61, %c2_62, %c3_63, %c0_64] : memref<1x4x16x16xf32, #tpu.memory_space<vmem>>, vector<1x1x12x16xf32>
    %40 = vector.shape_cast %39 : vector<1x1x12x16xf32> to vector<12x16xf32>
    %c0_65 = arith.constant 0 : index
    %c208 = arith.constant 208 : index
    %41 = vector.load %arg5[%c0_65, %c208] : memref<12x320xf32, #tpu.memory_space<vmem>>, vector<12x16xf32>
    tpu.vector_store %arg5[%c0_65, %c208], %40 {strides = array<i32>} : memref<12x320xf32, #tpu.memory_space<vmem>>, vector<12x16xf32>,
    %c0_66 = arith.constant 0 : index
    %c2_67 = arith.constant 2 : index
    %c4_68 = arith.constant 4 : index
    %c0_69 = arith.constant 0 : index
    %42 = vector.load %arg1[%c0_66, %c2_67, %c4_68, %c0_69] : memref<1x4x16x16xf32, #tpu.memory_space<vmem>>, vector<1x1x12x16xf32>
    %43 = vector.shape_cast %42 : vector<1x1x12x16xf32> to vector<12x16xf32>
    %c0_70 = arith.constant 0 : index
    %c224 = arith.constant 224 : index
    %44 = vector.load %arg5[%c0_70, %c224] : memref<12x320xf32, #tpu.memory_space<vmem>>, vector<12x16xf32>
    tpu.vector_store %arg5[%c0_70, %c224], %43 {strides = array<i32>} : memref<12x320xf32, #tpu.memory_space<vmem>>, vector<12x16xf32>,
    %c0_71 = arith.constant 0 : index
    %c3_72 = arith.constant 3 : index
    %c0_73 = arith.constant 0 : index
    %c0_74 = arith.constant 0 : index
    %45 = vector.load %arg1[%c0_71, %c3_72, %c0_73, %c0_74] : memref<1x4x16x16xf32, #tpu.memory_space<vmem>>, vector<1x1x12x16xf32>
    %46 = vector.shape_cast %45 : vector<1x1x12x16xf32> to vector<12x16xf32>
    %c0_75 = arith.constant 0 : index
    %c240 = arith.constant 240 : index
    %47 = vector.load %arg5[%c0_75, %c240] : memref<12x320xf32, #tpu.memory_space<vmem>>, vector<12x16xf32>
    tpu.vector_store %arg5[%c0_75, %c240], %46 {strides = array<i32>} : memref<12x320xf32, #tpu.memory_space<vmem>>, vector<12x16xf32>,
    %c0_76 = arith.constant 0 : index
    %c3_77 = arith.constant 3 : index
    %c1_78 = arith.constant 1 : index
    %c0_79 = arith.constant 0 : index
    %48 = vector.load %arg1[%c0_76, %c3_77, %c1_78, %c0_79] : memref<1x4x16x16xf32, #tpu.memory_space<vmem>>, vector<1x1x12x16xf32>
    %49 = vector.shape_cast %48 : vector<1x1x12x16xf32> to vector<12x16xf32>
    %c0_80 = arith.constant 0 : index
    %c256 = arith.constant 256 : index
    %50 = vector.load %arg5[%c0_80, %c256] : memref<12x320xf32, #tpu.memory_space<vmem>>, vector<12x16xf32>
    tpu.vector_store %arg5[%c0_80, %c256], %49 {strides = array<i32>} : memref<12x320xf32, #tpu.memory_space<vmem>>, vector<12x16xf32>,
    %c0_81 = arith.constant 0 : index
    %c3_82 = arith.constant 3 : index
    %c2_83 = arith.constant 2 : index
    %c0_84 = arith.constant 0 : index
    %51 = vector.load %arg1[%c0_81, %c3_82, %c2_83, %c0_84] : memref<1x4x16x16xf32, #tpu.memory_space<vmem>>, vector<1x1x12x16xf32>
    %52 = vector.shape_cast %51 : vector<1x1x12x16xf32> to vector<12x16xf32>
    %c0_85 = arith.constant 0 : index
    %c272 = arith.constant 272 : index
    %53 = vector.load %arg5[%c0_85, %c272] : memref<12x320xf32, #tpu.memory_space<vmem>>, vector<12x16xf32>
    tpu.vector_store %arg5[%c0_85, %c272], %52 {strides = array<i32>} : memref<12x320xf32, #tpu.memory_space<vmem>>, vector<12x16xf32>,
    %c0_86 = arith.constant 0 : index
    %c3_87 = arith.constant 3 : index
    %c3_88 = arith.constant 3 : index
    %c0_89 = arith.constant 0 : index
    %54 = vector.load %arg1[%c0_86, %c3_87, %c3_88, %c0_89] : memref<1x4x16x16xf32, #tpu.memory_space<vmem>>, vector<1x1x12x16xf32>
    %55 = vector.shape_cast %54 : vector<1x1x12x16xf32> to vector<12x16xf32>
    %c0_90 = arith.constant 0 : index
    %c288 = arith.constant 288 : index
    %56 = vector.load %arg5[%c0_90, %c288] : memref<12x320xf32, #tpu.memory_space<vmem>>, vector<12x16xf32>
    tpu.vector_store %arg5[%c0_90, %c288], %55 {strides = array<i32>} : memref<12x320xf32, #tpu.memory_space<vmem>>, vector<12x16xf32>,
    %c0_91 = arith.constant 0 : index
    %c3_92 = arith.constant 3 : index
    %c4_93 = arith.constant 4 : index
    %c0_94 = arith.constant 0 : index
    %57 = vector.load %arg1[%c0_91, %c3_92, %c4_93, %c0_94] : memref<1x4x16x16xf32, #tpu.memory_space<vmem>>, vector<1x1x12x16xf32>
    %58 = vector.shape_cast %57 : vector<1x1x12x16xf32> to vector<12x16xf32>
    %c0_95 = arith.constant 0 : index
    %c304 = arith.constant 304 : index
    %59 = vector.load %arg5[%c0_95, %c304] : memref<12x320xf32, #tpu.memory_space<vmem>>, vector<12x16xf32>
    tpu.vector_store %arg5[%c0_95, %c304], %58 {strides = array<i32>} : memref<12x320xf32, #tpu.memory_space<vmem>>, vector<12x16xf32>,
    %c0_96 = arith.constant 0 : index
    %c0_97 = arith.constant 0 : index
    %60 = vector.load %arg5[%c0_96, %c0_97] : memref<12x320xf32, #tpu.memory_space<vmem>>, vector<12x320xf32>
    %c0_98 = arith.constant 0 : index
    %c0_99 = arith.constant 0 : index
    %c0_100 = arith.constant 0 : index
    %61 = vector.load %arg2[%c0_98, %c0_99, %c0_100] : memref<2x320x36xf32, #tpu.memory_space<vmem>>, vector<1x320x36xf32>
    %62 = vector.shape_cast %61 : vector<1x320x36xf32> to vector<320x36xf32>
    %cst = arith.constant dense<0.000000e+00> : vector<12x36xf32>
    %63 = tpu.matmul %60, %62, %cst {dimension_numbers = #tpu.dot_dimension_numbers<[1], [0], [0], [1], [0, 0, 1, 1], [], []>} : vector<12x320xf32>, vector<320x36xf32>, vector<12x36xf32> -> vector<12x36xf32>
    %c1_101 = arith.constant 1 : index
    %c0_102 = arith.constant 0 : index
    %c0_103 = arith.constant 0 : index
    %64 = vector.load %arg2[%c1_101, %c0_102, %c0_103] : memref<2x320x36xf32, #tpu.memory_space<vmem>>, vector<1x320x36xf32>
    %65 = vector.shape_cast %64 : vector<1x320x36xf32> to vector<320x36xf32>
    %cst_104 = arith.constant dense<0.000000e+00> : vector<12x36xf32>
    %66 = tpu.matmul %60, %65, %cst_104 {dimension_numbers = #tpu.dot_dimension_numbers<[1], [0], [0], [1], [0, 0, 1, 1], [], []>} : vector<12x320xf32>, vector<320x36xf32>, vector<12x36xf32> -> vector<12x36xf32>
    %67 = arith.maximumf %63, %66 : vector<12x36xf32>
    %c0_105 = arith.constant 0 : index
    %c0_106 = arith.constant 0 : index
    %68 = vector.load %arg3[%c0_105, %c0_106] : memref<1x36xf32, #tpu.memory_space<vmem>>, vector<1x36xf32>
    %69 = vector.broadcast %68 : vector<1x36xf32> to vector<12x36xf32>
    %70 = arith.addf %67, %69 : vector<12x36xf32>
    %cst_107 = arith.constant 0.000000e+00 : f32
    %71 = vector.broadcast %cst_107 : f32 to vector<12x36xf32>
    %72 = arith.maximumf %70, %71 : vector<12x36xf32>
    %c0_108 = arith.constant 0 : index
    %c0_109 = arith.constant 0 : index
    %73 = vector.load %arg6[%c0_108, %c0_109] : memref<12x36xf32, #tpu.memory_space<vmem>>, vector<12x36xf32>
    tpu.vector_store %arg6[%c0_108, %c0_109], %72 {strides = array<i32>} : memref<12x36xf32, #tpu.memory_space<vmem>>, vector<12x36xf32>,
    %c0_110 = arith.constant 0 : index
    %c0_111 = arith.constant 0 : index
    %74 = tpu.strided_load %arg6[%c0_110, %c0_111] {strides = array<i32: 2, 1>} : memref<12x36xf32, #tpu.memory_space<vmem>>, vector<6x36xf32>
    %c1_112 = arith.constant 1 : index
    %c0_113 = arith.constant 0 : index
    %75 = tpu.strided_load %arg6[%c1_112, %c0_113] {strides = array<i32: 2, 1>} : memref<12x36xf32, #tpu.memory_space<vmem>>, vector<6x36xf32>
    %76 = arith.maximumf %74, %75 : vector<6x36xf32>
    %77 = vector.extract_strided_slice %76 {offsets = [0, 0], sizes = [6, 6], strides = [1, 1]} : vector<6x36xf32> to vector<6x6xf32>
    %c0_114 = arith.constant 0 : index
    %c0_115 = arith.constant 0 : index
    %c0_116 = arith.constant 0 : index
    %c0_117 = arith.constant 0 : index
    %78 = vector.load %arg4[%c0_114, %c0_115, %c0_116, %c0_117] : memref<1x6x6x6xf32, #tpu.memory_space<vmem>>, vector<1x1x6x6xf32>
    %79 = vector.shape_cast %78 : vector<1x1x6x6xf32> to vector<6x6xf32>
    %80 = vector.shape_cast %77 : vector<6x6xf32> to vector<1x1x6x6xf32>
    tpu.vector_store %arg4[%c0_114, %c0_115, %c0_116, %c0_117], %80 {strides = array<i32>} : memref<1x6x6x6xf32, #tpu.memory_space<vmem>>, vector<1x1x6x6xf32>,
    %81 = vector.extract_strided_slice %76 {offsets = [0, 6], sizes = [6, 6], strides = [1, 1]} : vector<6x36xf32> to vector<6x6xf32>
    %c0_118 = arith.constant 0 : index
    %c1_119 = arith.constant 1 : index
    %c0_120 = arith.constant 0 : index
    %c0_121 = arith.constant 0 : index
    %82 = vector.load %arg4[%c0_118, %c1_119, %c0_120, %c0_121] : memref<1x6x6x6xf32, #tpu.memory_space<vmem>>, vector<1x1x6x6xf32>
    %83 = vector.shape_cast %82 : vector<1x1x6x6xf32> to vector<6x6xf32>
    %84 = vector.shape_cast %81 : vector<6x6xf32> to vector<1x1x6x6xf32>
    tpu.vector_store %arg4[%c0_118, %c1_119, %c0_120, %c0_121], %84 {strides = array<i32>} : memref<1x6x6x6xf32, #tpu.memory_space<vmem>>, vector<1x1x6x6xf32>,
    %85 = vector.extract_strided_slice %76 {offsets = [0, 12], sizes = [6, 6], strides = [1, 1]} : vector<6x36xf32> to vector<6x6xf32>
    %c0_122 = arith.constant 0 : index
    %c2_123 = arith.constant 2 : index
    %c0_124 = arith.constant 0 : index
    %c0_125 = arith.constant 0 : index
    %86 = vector.load %arg4[%c0_122, %c2_123, %c0_124, %c0_125] : memref<1x6x6x6xf32, #tpu.memory_space<vmem>>, vector<1x1x6x6xf32>
    %87 = vector.shape_cast %86 : vector<1x1x6x6xf32> to vector<6x6xf32>
    %88 = vector.shape_cast %85 : vector<6x6xf32> to vector<1x1x6x6xf32>
    tpu.vector_store %arg4[%c0_122, %c2_123, %c0_124, %c0_125], %88 {strides = array<i32>} : memref<1x6x6x6xf32, #tpu.memory_space<vmem>>, vector<1x1x6x6xf32>,
    %89 = vector.extract_strided_slice %76 {offsets = [0, 18], sizes = [6, 6], strides = [1, 1]} : vector<6x36xf32> to vector<6x6xf32>
    %c0_126 = arith.constant 0 : index
    %c3_127 = arith.constant 3 : index
    %c0_128 = arith.constant 0 : index
    %c0_129 = arith.constant 0 : index
    %90 = vector.load %arg4[%c0_126, %c3_127, %c0_128, %c0_129] : memref<1x6x6x6xf32, #tpu.memory_space<vmem>>, vector<1x1x6x6xf32>
    %91 = vector.shape_cast %90 : vector<1x1x6x6xf32> to vector<6x6xf32>
    %92 = vector.shape_cast %89 : vector<6x6xf32> to vector<1x1x6x6xf32>
    tpu.vector_store %arg4[%c0_126, %c3_127, %c0_128, %c0_129], %92 {strides = array<i32>} : memref<1x6x6x6xf32, #tpu.memory_space<vmem>>, vector<1x1x6x6xf32>,
    %93 = vector.extract_strided_slice %76 {offsets = [0, 24], sizes = [6, 6], strides = [1, 1]} : vector<6x36xf32> to vector<6x6xf32>
    %c0_130 = arith.constant 0 : index
    %c4_131 = arith.constant 4 : index
    %c0_132 = arith.constant 0 : index
    %c0_133 = arith.constant 0 : index
    %94 = vector.load %arg4[%c0_130, %c4_131, %c0_132, %c0_133] : memref<1x6x6x6xf32, #tpu.memory_space<vmem>>, vector<1x1x6x6xf32>
    %95 = vector.shape_cast %94 : vector<1x1x6x6xf32> to vector<6x6xf32>
    %96 = vector.shape_cast %93 : vector<6x6xf32> to vector<1x1x6x6xf32>
    tpu.vector_store %arg4[%c0_130, %c4_131, %c0_132, %c0_133], %96 {strides = array<i32>} : memref<1x6x6x6xf32, #tpu.memory_space<vmem>>, vector<1x1x6x6xf32>,
    %97 = vector.extract_strided_slice %76 {offsets = [0, 30], sizes = [6, 6], strides = [1, 1]} : vector<6x36xf32> to vector<6x6xf32>
    %c0_134 = arith.constant 0 : index
    %c5 = arith.constant 5 : index
    %c0_135 = arith.constant 0 : index
    %c0_136 = arith.constant 0 : index
    %98 = vector.load %arg4[%c0_134, %c5, %c0_135, %c0_136] : memref<1x6x6x6xf32, #tpu.memory_space<vmem>>, vector<1x1x6x6xf32>
    %99 = vector.shape_cast %98 : vector<1x1x6x6xf32> to vector<6x6xf32>
    %100 = vector.shape_cast %97 : vector<6x6xf32> to vector<1x1x6x6xf32>
    tpu.vector_store %arg4[%c0_134, %c5, %c0_135, %c0_136], %100 {strides = array<i32>} : memref<1x6x6x6xf32, #tpu.memory_space<vmem>>, vector<1x1x6x6xf32>,
    return
  }
  func.func @transform_0(%arg0: i32) -> (i32, i32, i32, i32) {
    %c0_i32 = arith.constant 0 : i32
    %c0_i32_0 = arith.constant 0 : i32
    %c0_i32_1 = arith.constant 0 : i32
    %c0_i32_2 = arith.constant 0 : i32
    return %arg0, %c0_i32, %c0_i32_0, %c0_i32_1 : i32, i32, i32, i32
  }
  func.func @transform_1(%arg0: i32) -> (i32, i32, i32) {
    %c0_i32 = arith.constant 0 : i32
    %c0_i32_0 = arith.constant 0 : i32
    %c0_i32_1 = arith.constant 0 : i32
    %c0_i32_2 = arith.constant 0 : i32
    return %c0_i32, %c0_i32_0, %c0_i32_1 : i32, i32, i32
  }
  func.func @transform_2(%arg0: i32) -> (i32, i32) {
    %c0_i32 = arith.constant 0 : i32
    %c0_i32_0 = arith.constant 0 : i32
    %c0_i32_1 = arith.constant 0 : i32
    return %c0_i32, %c0_i32_0 : i32, i32
  }
  func.func @transform_3(%arg0: i32) -> (i32, i32, i32, i32) {
    %c0_i32 = arith.constant 0 : i32
    %c0_i32_0 = arith.constant 0 : i32
    %c0_i32_1 = arith.constant 0 : i32
    %c0_i32_2 = arith.constant 0 : i32
    return %arg0, %c0_i32, %c0_i32_0, %c0_i32_1 : i32, i32, i32, i32
  }
}

</mosaic_0001>

<llo_original>
// kernel: a_call__.1
$region0: #{a_call__.1}
  #allocation0 [shape = 'u32[]', space=smem, size = 0x4, offset = 0x4, fixed_abs, tag = 'smem constant byte address 0x4 - core index']
  #allocation1 [shape = 'u32[144,128]{1,0:T(1,128)}', space=vmem, size = 0x12000, scoped, tag = 'internal scratch']
  #allocation2 [shape = 'f32[12,320]{1,0:T(8,128)}', space=vmem, size = 0x6000, scoped, tag = 'scratch operand']
  #allocation3 [shape = 'f32[12,36]{1,0:T(8,128)}', space=vmem, size = 0x2000, scoped, tag = 'scratch operand']
  %s0 = inlined_call_operand.hbm [shape: f32[2,4,16,16], index: 0, kind: input, shape index: {}]
  %s1 = inlined_call_operand.hbm [shape: f32[2,320,36], index: 1, kind: input, shape index: {}]
  %s2 = inlined_call_operand.vmem [shape: f32[1,36], index: 2, kind: input, shape index: {}]
  %s3 = inlined_call_operand.vmem [shape: f32[2,6,6,6], index: 3, kind: output, shape index: {}]
  %s4 = sld [smem:[#allocation0]]
  $region53: #{a_call__.1} parent=0
    _
  %s6 = ssub.s32 1, %s4
  %s7 = scalar_select 0, %s6, %s4
  $region1: #{a_call__.1} parent=0
    #allocation4 [shape = 'u8[65536]{0}', space=vmem, size = 0x10000, scoped, tag = 'input window, operand 0']
    #allocation5 [shape = 's32[2]{0}', space=sflag, size = 0x8, scoped, tag = 'scoped memory for a_call__.1']
    #allocation6 [shape = 'u8[327680]{0}', space=vmem, size = 0x50000, scoped, tag = 'input window, operand 1, single buffered']
    #allocation7 [shape = 's32[1]{0}', space=sflag, size = 0x4, scoped, tag = 'scoped memory for a_call__.1']
    %8 = vsyncpa [#allocation5], 0
    %s9 = scalar_lea.sflag [#allocation5], 1
    %10 = vsyncpa %s9, 0
    %11 = vsyncpa [#allocation7], 0
    loop: start=0, step=1, limit=4
    $region2: #{a_call__.1} parent=1 // loop_pre_header
      _
    $region3: #{a_call__.1} parent=1 // loop_header
      %s13 = sphi 0, %s17
      %p14 = scmp.ge.s32.totalorder %s13, 4
      %s23 = sphi 0, %s25
      %s26 = sphi 0, %s23
      %s27 = sphi 0, %s26
      %s43 = sphi 0, %s27
      %s47 = sphi 0, %s47
      %s49 = sphi 0, %s47
      %s50 = sphi 0, %s49
      %s64 = sphi 0, %s50
      %s68 = sphi 0, %s68
      %s70 = sphi 0, %s68
      %s71 = sphi 0, %s70
      %s85 = sphi 0, %s71
      %s91 = sphi 0, %s93
      %s94 = sphi 0, %s91
      %s95 = sphi 0, %s94
      %s111 = sphi 0, %s95
    $region4: #{a_call__.1} parent=1 // loop_header_branch
      %16 = sbr.rel (%p14) target = $region8
    $region5: #{a_call__.1} parent=1 // loop_body
      %s18 = ssub.s32 %s13, 1
      %s19 = ssub.s32 %s13, 2
      %s20 = sadd.s32 %s13, 1
      %s21 = ssub.s32 %s13, %s20
      %p22 = scmp.eq.s32.totalorder %s21, 0
      %s24 = sadd.s32 %s23, 1
      %s25 = scalar_select %p22, %s23, %s24
      %p28 = pneg %p22
      %p29 = scmp.eq.s32.totalorder %s13, 1
      %p30 = por %p28, %p29
      %p31 = scmp.ne.s32.totalorder %s23, %s26
      %p32 = scmp.eq.s32.totalorder %s13, 0
      %p33 = por %p31, %p32
      %p34 = scmp.ne.s32.totalorder %s23, %s26
      %p35 = scmp.eq.s32.totalorder %s18, 1
      %p36 = por %p34, %p35
      %p37 = scmp.ne.s32.totalorder %s26, %s27
      %p38 = scmp.eq.s32.totalorder %s18, 0
      %p39 = por %p37, %p38
      %p40 = scmp.ne.s32.totalorder %s26, %s27
      %p41 = scmp.eq.s32.totalorder %s19, 1
      %p42 = por %p40, %p41
      %p44 = scmp.ne.s32.totalorder %s27, %s43
      %p45 = scmp.eq.s32.totalorder %s19, 0
      %p46 = por %p44, %p45
      %s48 = sadd.s32 %s47, 1
      %p51 = scmp.eq.s32.totalorder %s13, 1
      %p52 = scmp.ne.s32.totalorder %s47, %s49
      %p53 = scmp.eq.s32.totalorder %s13, 0
      %p54 = por %p52, %p53
      %p55 = scmp.ne.s32.totalorder %s47, %s49
      %p56 = scmp.eq.s32.totalorder %s18, 1
      %p57 = por %p55, %p56
      %p58 = scmp.ne.s32.totalorder %s49, %s50
      %p59 = scmp.eq.s32.totalorder %s18, 0
      %p60 = por %p58, %p59
      %p61 = scmp.ne.s32.totalorder %s49, %s50
      %p62 = scmp.eq.s32.totalorder %s19, 1
      %p63 = por %p61, %p62
      %p65 = scmp.ne.s32.totalorder %s50, %s64
      %p66 = scmp.eq.s32.totalorder %s19, 0
      %p67 = por %p65, %p66
      %s69 = sadd.s32 %s68, 1
      %p72 = scmp.eq.s32.totalorder %s13, 1
      %p73 = scmp.ne.s32.totalorder %s68, %s70
      %p74 = scmp.eq.s32.totalorder %s13, 0
      %p75 = por %p73, %p74
      %p76 = scmp.ne.s32.totalorder %s68, %s70
      %p77 = scmp.eq.s32.totalorder %s18, 1
      %p78 = por %p76, %p77
      %p79 = scmp.ne.s32.totalorder %s70, %s71
      %p80 = scmp.eq.s32.totalorder %s18, 0
      %p81 = por %p79, %p80
      %p82 = scmp.ne.s32.totalorder %s70, %s71
      %p83 = scmp.eq.s32.totalorder %s19, 1
      %p84 = por %p82, %p83
      %p86 = scmp.ne.s32.totalorder %s71, %s85
      %p87 = scmp.eq.s32.totalorder %s19, 0
      %p88 = por %p86, %p87
      %s89 = ssub.s32 %s13, %s20
      %p90 = scmp.eq.s32.totalorder %s89, 0
      %s92 = sadd.s32 %s91, 1
      %s93 = scalar_select %p90, %s91, %s92
      %p96 = pneg %p90
      %p97 = scmp.eq.s32.totalorder %s13, 1
      %p98 = por %p96, %p97
      %p99 = scmp.ne.s32.totalorder %s91, %s94
      %p100 = scmp.eq.s32.totalorder %s13, 0
      %p101 = por %p99, %p100
      %p102 = scmp.ne.s32.totalorder %s91, %s94
      %p103 = scmp.eq.s32.totalorder %s18, 1
      %p104 = por %p102, %p103
      %p105 = scmp.ne.s32.totalorder %s94, %s95
      %p106 = scmp.eq.s32.totalorder %s18, 0
      %p107 = por %p105, %p106
      %p108 = scmp.ne.s32.totalorder %s94, %s95
      %p109 = scmp.eq.s32.totalorder %s19, 1
      %p110 = por %p108, %p109
      %p112 = scmp.ne.s32.totalorder %s95, %s111
      %p113 = scmp.eq.s32.totalorder %s19, 0
      %p114 = por %p112, %p113
      %p115 = scmp.le.s32.totalorder 1, %s13
      %p116 = scmp.lt.s32.totalorder %s13, 3
      %p117 = pnand %p115, %p116
      %p118 = pneg %p117
      // Predicated region
      $region9: #{a_call__.1} parent=5 // pred_check
        _
      $region10: #{a_call__.1} parent=5 // pred_check_branch
        %120 = sbr.rel (%p117) target = $region12
      $region11: #{a_call__.1} parent=5 // pred_region
        %s121 = ssub.s32 %s13, 1
        // Predicated region
        $region13: #{a_call__.1} parent=11 // pred_check
          %p122 = pneg %p60
        $region14: #{a_call__.1} parent=11 // pred_check_branch
          %124 = sbr.rel (%p122) target = $region16
        $region15: #{a_call__.1} parent=11 // pred_region
          %s126 = ssub.s32 10240, 10240
          %127 = vsyncadd [#allocation7], %s126
          %s128 = sshll.u32 [#allocation6], 4
          %s129 = int_to_ptr.vmem [resolvable:$true] %s128
          %134 = dma.hbm_to_vmem [thread:$0]  %s1, 10240, %s129, [#allocation7], 128, 128, 8
        $region16: #{a_call__.1} parent=11 // pred_fallthru
          _
        // Predicated region
        $region17: #{a_call__.1} parent=11 // pred_check
          %p135 = pneg %p81
        $region18: #{a_call__.1} parent=11 // pred_check_branch
          %137 = sbr.rel (%p135) target = $region20
        $region19: #{a_call__.1} parent=11 // pred_region
          _
        $region20: #{a_call__.1} parent=11 // pred_fallthru
          _
      $region12: #{a_call__.1} parent=5 // pred_fallthru
        _
      %p138 = scmp.lt.s32.totalorder %s13, 2
      // Predicated region
      $region21: #{a_call__.1} parent=5 // pred_check
        %p139 = pneg %p138
      $region22: #{a_call__.1} parent=5 // pred_check_branch
        %141 = sbr.rel (%p139) target = $region24
      $region23: #{a_call__.1} parent=5 // pred_region
        // Predicated region
        $region25: #{a_call__.1} parent=23 // pred_check
          %p142 = pneg %p33
        $region26: #{a_call__.1} parent=23 // pred_check_branch
          %144 = sbr.rel (%p142) target = $region28
        $region27: #{a_call__.1} parent=23 // pred_region
          %s145 = sand.u32 %s23, 1
          %s146 = scalar_lea.sflag [#allocation5], %s145
          %s147 = sand.u32 %s23, 1
          %s148 = smul.addr %s147, 64
          %s149 = scalar_lea.vmem [#allocation4], %s148
          %s151 = ssub.s32 1024, 1024
          %152 = vsyncadd %s146, %s151
          %s153 = smul.addr %s13, 8
          %s154 = smul.addr %s153, 128
          %s155 = scalar_lea.hbm %s0, %s154
          %s156 = sshll.u32 %s149, 4
          %s157 = int_to_ptr.vmem [resolvable:$true] %s156
          %162 = dma.hbm_to_vmem [thread:$0]  %s155, 1024, %s157, %s146, 128, 128, 8
        $region28: #{a_call__.1} parent=23 // pred_fallthru
          _
      $region24: #{a_call__.1} parent=5 // pred_fallthru
        _
      %p163 = scmp.le.s32.totalorder 1, %s13
      %p164 = scmp.lt.s32.totalorder %s13, 3
      %p165 = pnand %p163, %p164
      %p166 = pneg %p165
      // Predicated region
      $region29: #{a_call__.1} parent=5 // pred_check
        _
      $region30: #{a_call__.1} parent=5 // pred_check_branch
        %168 = sbr.rel (%p165) target = $region32
      $region31: #{a_call__.1} parent=5 // pred_region
        %s169 = ssub.s32 %s13, 1
        %s170 = sand.u32 %s26, 1
        %s171 = scalar_lea.sflag [#allocation5], %s170
        %s172 = sand.u32 %s26, 1
        %s173 = smul.addr %s172, 64
        %s174 = scalar_lea.vmem [#allocation4], %s173
        // Predicated region
        $region33: #{a_call__.1} parent=31 // pred_check
          %p175 = pneg %p39
        $region34: #{a_call__.1} parent=31 // pred_check_branch
          %177 = sbr.rel (%p175) target = $region36
        $region35: #{a_call__.1} parent=31 // pred_region
          %178 = dma.done %s171, 1024
        $region36: #{a_call__.1} parent=31 // pred_fallthru
          _
        // Predicated region
        $region37: #{a_call__.1} parent=31 // pred_check
          %p179 = pneg %p60
        $region38: #{a_call__.1} parent=31 // pred_check_branch
          %181 = sbr.rel (%p179) target = $region40
        $region39: #{a_call__.1} parent=31 // pred_region
          %182 = dma.done [#allocation7], 10240
        $region40: #{a_call__.1} parent=31 // pred_fallthru
          _
        %s183 = sand.u32 %s26, 1
        %s184 = scalar_lea.sflag [#allocation5], %s183
        %s185 = sand.u32 %s26, 1
        %s186 = smul.addr %s185, 64
        %s187 = scalar_lea.vmem [#allocation4], %s186
        %p188 = pneg %p39
        %p189 = pneg %p36
        %p190 = pneg %p60
        %p191 = pneg %p57
        %p192 = pneg %p81
        %p193 = pneg %p78
        %p194 = pneg %p107
        %p195 = pneg %p104
        %p196 = scmp.lt.s32.totalorder %s18, 1
        %s197 = scalar_select %p196, %s18, 1
        %s198 = smul.addr %s197, 6
        %s199 = smul.addr %s198, 8
        %s200 = scalar_lea.vmem %s3, %s199
        %p201 = scmp.lt.s32.totalorder %s18, 1
        %s202 = scalar_select %p201, %s18, 1
        %s203 = smul.addr %s202, 6
        %s204 = smul.addr %s203, 8
        %s205 = scalar_lea.vmem %s3, %s204
        %v206 = vld [vmem:[%s174] sm:$0xff]
        %v207 = vld [vmem:[%s174 + $0x8] sm:$0xf]
        %vm208 = vcmask 130048
        %209 = vst.msk [vmem:[#allocation2] sm:$0xff] %vm208, %v206
        %vm210 = vcmask 125952
        %211 = vst.msk [vmem:[#allocation2 + $0x18] sm:$0xf] %vm210, %v207
        %v212 = vld [vmem:[%s174 + $0x1] sm:$0xff]
        %v213 = vld [vmem:[%s174 + $0x9] sm:$0xf]
        %216 = vrot.lane.b32.xlu0 %v212, 16
        %v217 = vpop.permute.xlu0 %216
        %218 = vrot.lane.b32.xlu0 %v213, 16
        %v219 = vpop.permute.xlu0 %218
        %vm222 = vcmask 261248
        %223 = vst.msk [vmem:[#allocation2] sm:$0xff] %vm222, %v217
        %vm224 = vcmask 257152
        %225 = vst.msk [vmem:[#allocation2 + $0x18] sm:$0xf] %vm224, %v219
        %v226 = vld [vmem:[%s174 + $0x2] sm:$0xff]
        %v227 = vld [vmem:[%s174 + $0xa] sm:$0xf]
        %230 = vrot.lane.b32.xlu0 %v226, 32
        %v231 = vpop.permute.xlu0 %230
        %232 = vrot.lane.b32.xlu0 %v227, 32
        %v233 = vpop.permute.xlu0 %232
        %vm236 = vcmask 392448
        %237 = vst.msk [vmem:[#allocation2] sm:$0xff] %vm236, %v231
        %vm238 = vcmask 388352
        %239 = vst.msk [vmem:[#allocation2 + $0x18] sm:$0xf] %vm238, %v233
        %v240 = vld [vmem:[%s174 + $0x3] sm:$0xff]
        %v241 = vld [vmem:[%s174 + $0xb] sm:$0xf]
        %244 = vrot.lane.b32.xlu0 %v240, 48
        %v245 = vpop.permute.xlu0 %244
        %246 = vrot.lane.b32.xlu0 %v241, 48
        %v247 = vpop.permute.xlu0 %246
        %vm250 = vcmask 523648
        %251 = vst.msk [vmem:[#allocation2] sm:$0xff] %vm250, %v245
        %vm252 = vcmask 519552
        %253 = vst.msk [vmem:[#allocation2 + $0x18] sm:$0xf] %vm252, %v247
        %v254 = vld [vmem:[%s174 + $0x4] sm:$0xff]
        %v255 = vld [vmem:[%s174 + $0xc] sm:$0xf]
        %258 = vrot.lane.b32.xlu0 %v254, 64
        %v259 = vpop.permute.xlu0 %258
        %260 = vrot.lane.b32.xlu0 %v255, 64
        %v261 = vpop.permute.xlu0 %260
        %vm264 = vcmask 654848
        %265 = vst.msk [vmem:[#allocation2] sm:$0xff] %vm264, %v259
        %vm266 = vcmask 650752
        %267 = vst.msk [vmem:[#allocation2 + $0x18] sm:$0xf] %vm266, %v261
        %s268 = scalar_lea.vmem %s174, 16 [#allocation4]
        %v269 = vld [vmem:[%s268] sm:$0xff]
        %v270 = vld [vmem:[%s268 + $0x8] sm:$0xf]
        %273 = vrot.lane.b32.xlu0 %v269, 80
        %v274 = vpop.permute.xlu0 %273
        %275 = vrot.lane.b32.xlu0 %v270, 80
        %v276 = vpop.permute.xlu0 %275
        %vm279 = vcmask 786048
        %280 = vst.msk [vmem:[#allocation2] sm:$0xff] %vm279, %v274
        %vm281 = vcmask 781952
        %282 = vst.msk [vmem:[#allocation2 + $0x18] sm:$0xf] %vm281, %v276
        %v283 = vld [vmem:[%s268 + $0x1] sm:$0xff]
        %v284 = vld [vmem:[%s268 + $0x9] sm:$0xf]
        %287 = vrot.lane.b32.xlu0 %v283, 96
        %v288 = vpop.permute.xlu0 %287
        %289 = vrot.lane.b32.xlu0 %v284, 96
        %v290 = vpop.permute.xlu0 %289
        %vm293 = vcmask 917248
        %294 = vst.msk [vmem:[#allocation2] sm:$0xff] %vm293, %v288
        %vm295 = vcmask 913152
        %296 = vst.msk [vmem:[#allocation2 + $0x18] sm:$0xf] %vm295, %v290
        %v297 = vld [vmem:[%s268 + $0x2] sm:$0xff]
        %v298 = vld [vmem:[%s268 + $0xa] sm:$0xf]
        %301 = vrot.lane.b32.xlu0 %v297, 112
        %v302 = vpop.permute.xlu0 %301
        %303 = vrot.lane.b32.xlu0 %v298, 112
        %v304 = vpop.permute.xlu0 %303
        %vm307 = vcmask 1048448
        %308 = vst.msk [vmem:[#allocation2] sm:$0xff] %vm307, %v302
        %vm309 = vcmask 1044352
        %310 = vst.msk [vmem:[#allocation2 + $0x18] sm:$0xf] %vm309, %v304
        %v311 = vld [vmem:[%s268 + $0x3] sm:$0xff]
        %v312 = vld [vmem:[%s268 + $0xb] sm:$0xf]
        %313 = vst.msk [vmem:[#allocation2 + $0x8] sm:$0xff] %vm208, %v311
        %314 = vst.msk [vmem:[#allocation2 + $0x20] sm:$0xf] %vm210, %v312
        %v315 = vld [vmem:[%s268 + $0x4] sm:$0xff]
        %v316 = vld [vmem:[%s268 + $0xc] sm:$0xf]
        %319 = vrot.lane.b32.xlu0 %v315, 16
        %v320 = vpop.permute.xlu0 %319
        %321 = vrot.lane.b32.xlu0 %v316, 16
        %v322 = vpop.permute.xlu0 %321
        %325 = vst.msk [vmem:[#allocation2 + $0x8] sm:$0xff] %vm222, %v320
        %326 = vst.msk [vmem:[#allocation2 + $0x20] sm:$0xf] %vm224, %v322
        %s327 = scalar_lea.vmem %s174, 32 [#allocation4]
        %v328 = vld [vmem:[%s327] sm:$0xff]
        %v329 = vld [vmem:[%s327 + $0x8] sm:$0xf]
        %332 = vrot.lane.b32.xlu0 %v328, 32
        %v333 = vpop.permute.xlu0 %332
        %334 = vrot.lane.b32.xlu0 %v329, 32
        %v335 = vpop.permute.xlu0 %334
        %338 = vst.msk [vmem:[#allocation2 + $0x8] sm:$0xff] %vm236, %v333
        %339 = vst.msk [vmem:[#allocation2 + $0x20] sm:$0xf] %vm238, %v335
        %v340 = vld [vmem:[%s327 + $0x1] sm:$0xff]
        %v341 = vld [vmem:[%s327 + $0x9] sm:$0xf]
        %344 = vrot.lane.b32.xlu0 %v340, 48
        %v345 = vpop.permute.xlu0 %344
        %346 = vrot.lane.b32.xlu0 %v341, 48
        %v347 = vpop.permute.xlu0 %346
        %350 = vst.msk [vmem:[#allocation2 + $0x8] sm:$0xff] %vm250, %v345
        %351 = vst.msk [vmem:[#allocation2 + $0x20] sm:$0xf] %vm252, %v347
        %v352 = vld [vmem:[%s327 + $0x2] sm:$0xff]
        %v353 = vld [vmem:[%s327 + $0xa] sm:$0xf]
        %356 = vrot.lane.b32.xlu0 %v352, 64
        %v357 = vpop.permute.xlu0 %356
        %358 = vrot.lane.b32.xlu0 %v353, 64
        %v359 = vpop.permute.xlu0 %358
        %362 = vst.msk [vmem:[#allocation2 + $0x8] sm:$0xff] %vm264, %v357
        %363 = vst.msk [vmem:[#allocation2 + $0x20] sm:$0xf] %vm266, %v359
        %v364 = vld [vmem:[%s327 + $0x3] sm:$0xff]
        %v365 = vld [vmem:[%s327 + $0xb] sm:$0xf]
        %368 = vrot.lane.b32.xlu0 %v364, 80
        %v369 = vpop.permute.xlu0 %368
        %370 = vrot.lane.b32.xlu0 %v365, 80
        %v371 = vpop.permute.xlu0 %370
        %374 = vst.msk [vmem:[#allocation2 + $0x8] sm:$0xff] %vm279, %v369
        %375 = vst.msk [vmem:[#allocation2 + $0x20] sm:$0xf] %vm281, %v371
        %v376 = vld [vmem:[%s327 + $0x4] sm:$0xff]
        %v377 = vld [vmem:[%s327 + $0xc] sm:$0xf]
        %380 = vrot.lane.b32.xlu0 %v376, 96
        %v381 = vpop.permute.xlu0 %380
        %382 = vrot.lane.b32.xlu0 %v377, 96
        %v383 = vpop.permute.xlu0 %382
        %386 = vst.msk [vmem:[#allocation2 + $0x8] sm:$0xff] %vm293, %v381
        %387 = vst.msk [vmem:[#allocation2 + $0x20] sm:$0xf] %vm295, %v383
        %s388 = scalar_lea.vmem %s174, 48 [#allocation4]
        %v389 = vld [vmem:[%s388] sm:$0xff]
        %v390 = vld [vmem:[%s388 + $0x8] sm:$0xf]
        %393 = vrot.lane.b32.xlu0 %v389, 112
        %v394 = vpop.permute.xlu0 %393
        %395 = vrot.lane.b32.xlu0 %v390, 112
        %v396 = vpop.permute.xlu0 %395
        %399 = vst.msk [vmem:[#allocation2 + $0x8] sm:$0xff] %vm307, %v394
        %400 = vst.msk [vmem:[#allocation2 + $0x20] sm:$0xf] %vm309, %v396
        %v401 = vld [vmem:[%s388 + $0x1] sm:$0xff]
        %v402 = vld [vmem:[%s388 + $0x9] sm:$0xf]
        %403 = vst.msk [vmem:[#allocation2 + $0x10] sm:$0xff] %vm208, %v401
        %404 = vst.msk [vmem:[#allocation2 + $0x28] sm:$0xf] %vm210, %v402
        %v405 = vld [vmem:[%s388 + $0x2] sm:$0xff]
        %v406 = vld [vmem:[%s388 + $0xa] sm:$0xf]
        %409 = vrot.lane.b32.xlu0 %v405, 16
        %v410 = vpop.permute.xlu0 %409
        %411 = vrot.lane.b32.xlu0 %v406, 16
        %v412 = vpop.permute.xlu0 %411
        %415 = vst.msk [vmem:[#allocation2 + $0x10] sm:$0xff] %vm222, %v410
        %416 = vst.msk [vmem:[#allocation2 + $0x28] sm:$0xf] %vm224, %v412
        %v417 = vld [vmem:[%s388 + $0x3] sm:$0xff]
        %v418 = vld [vmem:[%s388 + $0xb] sm:$0xf]
        %421 = vrot.lane.b32.xlu0 %v417, 32
        %v422 = vpop.permute.xlu0 %421
        %423 = vrot.lane.b32.xlu0 %v418, 32
        %v424 = vpop.permute.xlu0 %423
        %427 = vst.msk [vmem:[#allocation2 + $0x10] sm:$0xff] %vm236, %v422
        %428 = vst.msk [vmem:[#allocation2 + $0x28] sm:$0xf] %vm238, %v424
        %v429 = vld [vmem:[%s388 + $0x4] sm:$0xff]
        %v430 = vld [vmem:[%s388 + $0xc] sm:$0xf]
        %433 = vrot.lane.b32.xlu0 %v429, 48
        %v434 = vpop.permute.xlu0 %433
        %435 = vrot.lane.b32.xlu0 %v430, 48
        %v436 = vpop.permute.xlu0 %435
        %439 = vst.msk [vmem:[#allocation2 + $0x10] sm:$0xff] %vm250, %v434
        %440 = vst.msk [vmem:[#allocation2 + $0x28] sm:$0xf] %vm252, %v436
        %v441 = vld [vmem:[#allocation2] sm:$0xff]
        %v442 = vld [vmem:[#allocation2 + $0x8] sm:$0xff]
        %v443 = vld [vmem:[#allocation2 + $0x10] sm:$0xff]
        %v444 = vld [vmem:[#allocation2 + $0x18] sm:$0xf]
        %v445 = vld [vmem:[#allocation2 + $0x20] sm:$0xf]
        %v446 = vld [vmem:[#allocation2 + $0x28] sm:$0xf]
        %v447 = vld [vmem:[#allocation6] sm:$0xff]
        %v448 = vld [vmem:[#allocation6 + $0x8] sm:$0xff]
        %v449 = vld [vmem:[#allocation6 + $0x10] sm:$0xff]
        %v450 = vld [vmem:[#allocation6 + $0x18] sm:$0xff]
        %v451 = vld [vmem:[#allocation6 + $0x20] sm:$0xff]
        %v452 = vld [vmem:[#allocation6 + $0x28] sm:$0xff]
        %v453 = vld [vmem:[#allocation6 + $0x30] sm:$0xff]
        %v454 = vld [vmem:[#allocation6 + $0x38] sm:$0xff]
        %v455 = vld [vmem:[#allocation6 + $0x40] sm:$0xff]
        %v456 = vld [vmem:[#allocation6 + $0x48] sm:$0xff]
        %v457 = vld [vmem:[#allocation6 + $0x50] sm:$0xff]
        %v458 = vld [vmem:[#allocation6 + $0x58] sm:$0xff]
        %v459 = vld [vmem:[#allocation6 + $0x60] sm:$0xff]
        %v460 = vld [vmem:[#allocation6 + $0x68] sm:$0xff]
        %v461 = vld [vmem:[#allocation6 + $0x70] sm:$0xff]
        %v462 = vld [vmem:[#allocation6 + $0x78] sm:$0xff]
        %v463 = vld [vmem:[#allocation6 + $0x80] sm:$0xff]
        %v464 = vld [vmem:[#allocation6 + $0x88] sm:$0xff]
        %v465 = vld [vmem:[#allocation6 + $0x90] sm:$0xff]
        %v466 = vld [vmem:[#allocation6 + $0x98] sm:$0xff]
        %v467 = vld [vmem:[#allocation6 + $0xa0] sm:$0xff]
        %v468 = vld [vmem:[#allocation6 + $0xa8] sm:$0xff]
        %v469 = vld [vmem:[#allocation6 + $0xb0] sm:$0xff]
        %v470 = vld [vmem:[#allocation6 + $0xb8] sm:$0xff]
        %v471 = vld [vmem:[#allocation6 + $0xc0] sm:$0xff]
        %v472 = vld [vmem:[#allocation6 + $0xc8] sm:$0xff]
        %v473 = vld [vmem:[#allocation6 + $0xd0] sm:$0xff]
        %v474 = vld [vmem:[#allocation6 + $0xd8] sm:$0xff]
        %v475 = vld [vmem:[#allocation6 + $0xe0] sm:$0xff]
        %v476 = vld [vmem:[#allocation6 + $0xe8] sm:$0xff]
        %v477 = vld [vmem:[#allocation6 + $0xf0] sm:$0xff]
        %v478 = vld [vmem:[#allocation6 + $0xf8] sm:$0xff]
        %v479 = vld [vmem:[#allocation6 + $0x100] sm:$0xff]
        %v480 = vld [vmem:[#allocation6 + $0x108] sm:$0xff]
        %v481 = vld [vmem:[#allocation6 + $0x110] sm:$0xff]
        %v482 = vld [vmem:[#allocation6 + $0x118] sm:$0xff]
        %v483 = vld [vmem:[#allocation6 + $0x120] sm:$0xff]
        %v484 = vld [vmem:[#allocation6 + $0x128] sm:$0xff]
        %v485 = vld [vmem:[#allocation6 + $0x130] sm:$0xff]
        %v486 = vld [vmem:[#allocation6 + $0x138] sm:$0xff]
        %vm487 = vcmask 523264
        %v489 = vsel %vm487, %v443, 0
        %v492 = vsel %vm487, %v446, 0
        %494 = vmatprep.subr.mxu0 0.0
        %495 = vmatpush1.msra.mxu0 %v462
        %496 = vmatprep.subr.mxu0 0.0
        %497 = vmatpush1.msra.mxu0 %v461
        %498 = vmatprep.subr.mxu0 0.0
        %499 = vmatpush1.msra.mxu0 %v460
        %500 = vmatprep.subr.mxu0 0.0
        %501 = vmatpush1.msra.mxu0 %v459
        %502 = vmatprep.subr.mxu0 0.0
        %503 = vmatpush1.msra.mxu0 %v458
        %504 = vmatprep.subr.mxu0 0.0
        %505 = vmatpush1.msra.mxu0 %v457
        %506 = vmatprep.subr.mxu0 0.0
        %507 = vmatpush1.msra.mxu0 %v456
        %508 = vmatprep.subr.mxu0 0.0
        %509 = vmatpush1.msra.mxu0 %v455
        %510 = vmatprep.subr.mxu0 0.0
        %511 = vmatpush1.msra.mxu0 %v454
        %512 = vmatprep.subr.mxu0 0.0
        %513 = vmatpush1.msra.mxu0 %v453
        %514 = vmatprep.subr.mxu0 0.0
        %515 = vmatpush1.msra.mxu0 %v452
        %516 = vmatprep.subr.mxu0 0.0
        %517 = vmatpush1.msra.mxu0 %v451
        %518 = vmatprep.subr.mxu0 0.0
        %519 = vmatpush1.msra.mxu0 %v450
        %520 = vmatprep.subr.mxu0 0.0
        %521 = vmatpush1.msra.mxu0 %v449
        %522 = vmatprep.subr.mxu0 0.0
        %523 = vmatpush1.msra.mxu0 %v448
        %524 = vmatprep.subr.mxu0 0.0
        %525 = vmatpush1.msra.mxu0 %v447
        %526 = vmatprep.subr.mxu0 0.0
        %527 = vmatpush2.msra.mxu0 %v478
        %528 = vmatprep.subr.mxu0 0.0
        %529 = vmatpush2.msra.mxu0 %v477
        %530 = vmatprep.subr.mxu0 0.0
        %531 = vmatpush2.msra.mxu0 %v476
        %532 = vmatprep.subr.mxu0 0.0
        %533 = vmatpush2.msra.mxu0 %v475
        %534 = vmatprep.subr.mxu0 0.0
        %535 = vmatpush2.msra.mxu0 %v474
        %536 = vmatprep.subr.mxu0 0.0
        %537 = vmatpush2.msra.mxu0 %v473
        %538 = vmatprep.subr.mxu0 0.0
        %539 = vmatpush2.msra.mxu0 %v472
        %540 = vmatprep.subr.mxu0 0.0
        %541 = vmatpush2.msra.mxu0 %v471
        %542 = vmatprep.subr.mxu0 0.0
        %543 = vmatpush2.msra.mxu0 %v470
        %544 = vmatprep.subr.mxu0 0.0
        %545 = vmatpush2.msra.mxu0 %v469
        %546 = vmatprep.subr.mxu0 0.0
        %547 = vmatpush2.msra.mxu0 %v468
        %548 = vmatprep.subr.mxu0 0.0
        %549 = vmatpush2.msra.mxu0 %v467
        %550 = vmatprep.subr.mxu0 0.0
        %551 = vmatpush2.msra.mxu0 %v466
        %552 = vmatprep.subr.mxu0 0.0
        %553 = vmatpush2.msra.mxu0 %v465
        %554 = vmatprep.subr.mxu0 0.0
        %555 = vmatpush2.msra.mxu0 %v464
        %556 = vmatprep.subr.mxu0 0.0
        %557 = vmatpush2.msra.mxu0 %v463
        %558 = vmatprep.mubr.f32.mxu0 %v442
        %559 = vmatmul.mubr.f32.gmra.mxu0 %v441
        %v560 = vpop.f32.mrf.mxu0
        %v561 = vadd.f32 0.0, %v560
        %v562 = vpop.f32.mrf.mxu0
        %563 = vmatprep.mubr.f32.mxu0 %v445
        %564 = vmatmul.mubr.f32.gmra.mxu0 %v444
        %v565 = vpop.f32.mrf.mxu0
        %v566 = vadd.f32 0.0, %v565
        %v567 = vpop.f32.mrf.mxu0
        %568 = vdwg.mxu0
        %569 = vmatprep.subr.mxu0 0.0
        %570 = vmatpush1.msra.mxu0 0.0
        %571 = vmatprep.subr.mxu0 0.0
        %572 = vmatpush1.msra.mxu0 0.0
        %573 = vmatprep.subr.mxu0 0.0
        %574 = vmatpush1.msra.mxu0 0.0
        %575 = vmatprep.subr.mxu0 0.0
        %576 = vmatpush1.msra.mxu0 0.0
        %577 = vmatprep.subr.mxu0 0.0
        %578 = vmatpush1.msra.mxu0 0.0
        %579 = vmatprep.subr.mxu0 0.0
        %580 = vmatpush1.msra.mxu0 0.0
        %581 = vmatprep.subr.mxu0 0.0
        %582 = vmatpush1.msra.mxu0 0.0
        %583 = vmatprep.subr.mxu0 0.0
        %584 = vmatpush1.msra.mxu0 0.0
        %585 = vmatprep.subr.mxu0 0.0
        %586 = vmatpush1.msra.mxu0 %v486
        %587 = vmatprep.subr.mxu0 0.0
        %588 = vmatpush1.msra.mxu0 %v485
        %589 = vmatprep.subr.mxu0 0.0
        %590 = vmatpush1.msra.mxu0 %v484
        %591 = vmatprep.subr.mxu0 0.0
        %592 = vmatpush1.msra.mxu0 %v483
        %593 = vmatprep.subr.mxu0 0.0
        %594 = vmatpush1.msra.mxu0 %v482
        %595 = vmatprep.subr.mxu0 0.0
        %596 = vmatpush1.msra.mxu0 %v481
        %597 = vmatprep.subr.mxu0 0.0
        %598 = vmatpush1.msra.mxu0 %v480
        %599 = vmatprep.subr.mxu0 0.0
        %600 = vmatpush1.msra.mxu0 %v479
        %601 = vmatprep.subr.mxu0 0.0
        %602 = vmatpush2.msra.mxu0 0.0
        %603 = vmatprep.subr.mxu0 0.0
        %604 = vmatpush2.msra.mxu0 0.0
        %605 = vmatprep.subr.mxu0 0.0
        %606 = vmatpush2.msra.mxu0 0.0
        %607 = vmatprep.subr.mxu0 0.0
        %608 = vmatpush2.msra.mxu0 0.0
        %609 = vmatprep.subr.mxu0 0.0
        %610 = vmatpush2.msra.mxu0 0.0
        %611 = vmatprep.subr.mxu0 0.0
        %612 = vmatpush2.msra.mxu0 0.0
        %613 = vmatprep.subr.mxu0 0.0
        %614 = vmatpush2.msra.mxu0 0.0
        %615 = vmatprep.subr.mxu0 0.0
        %616 = vmatpush2.msra.mxu0 0.0
        %617 = vmatprep.subr.mxu0 0.0
        %618 = vmatpush2.msra.mxu0 0.0
        %619 = vmatprep.subr.mxu0 0.0
        %620 = vmatpush2.msra.mxu0 0.0
        %621 = vmatprep.subr.mxu0 0.0
        %622 = vmatpush2.msra.mxu0 0.0
        %623 = vmatprep.subr.mxu0 0.0
        %624 = vmatpush2.msra.mxu0 0.0
        %625 = vmatprep.subr.mxu0 0.0
        %626 = vmatpush2.msra.mxu0 0.0
        %627 = vmatprep.subr.mxu0 0.0
        %628 = vmatpush2.msra.mxu0 0.0
        %629 = vmatprep.subr.mxu0 0.0
        %630 = vmatpush2.msra.mxu0 0.0
        %631 = vmatprep.subr.mxu0 0.0
        %632 = vmatpush2.msra.mxu0 0.0
        %633 = vmatprep.mubr.f32.mxu0 0.0
        %634 = vmatmul.mubr.f32.gmra.mxu0 %v489
        %v635 = vpop.f32.mrf.mxu0
        %v636 = vadd.f32 %v561, %v635
        %v637 = vpop.f32.mrf.mxu0
        %638 = vmatprep.mubr.f32.mxu0 0.0
        %639 = vmatmul.mubr.f32.gmra.mxu0 %v492
        %v640 = vpop.f32.mrf.mxu0
        %v641 = vadd.f32 %v566, %v640
        %v642 = vpop.f32.mrf.mxu0
        %643 = vdwg.mxu0
        %s644 = scalar_lea.vmem [#allocation6], 320
        %v645 = vld [vmem:[%s644] sm:$0xff]
        %v646 = vld [vmem:[%s644 + $0x8] sm:$0xff]
        %v647 = vld [vmem:[%s644 + $0x10] sm:$0xff]
        %v648 = vld [vmem:[%s644 + $0x18] sm:$0xff]
        %v649 = vld [vmem:[%s644 + $0x20] sm:$0xff]
        %v650 = vld [vmem:[%s644 + $0x28] sm:$0xff]
        %v651 = vld [vmem:[%s644 + $0x30] sm:$0xff]
        %v652 = vld [vmem:[%s644 + $0x38] sm:$0xff]
        %v653 = vld [vmem:[%s644 + $0x40] sm:$0xff]
        %v654 = vld [vmem:[%s644 + $0x48] sm:$0xff]
        %v655 = vld [vmem:[%s644 + $0x50] sm:$0xff]
        %v656 = vld [vmem:[%s644 + $0x58] sm:$0xff]
        %v657 = vld [vmem:[%s644 + $0x60] sm:$0xff]
        %v658 = vld [vmem:[%s644 + $0x68] sm:$0xff]
        %v659 = vld [vmem:[%s644 + $0x70] sm:$0xff]
        %v660 = vld [vmem:[%s644 + $0x78] sm:$0xff]
        %v661 = vld [vmem:[%s644 + $0x80] sm:$0xff]
        %v662 = vld [vmem:[%s644 + $0x88] sm:$0xff]
        %v663 = vld [vmem:[%s644 + $0x90] sm:$0xff]
        %v664 = vld [vmem:[%s644 + $0x98] sm:$0xff]
        %v665 = vld [vmem:[%s644 + $0xa0] sm:$0xff]
        %v666 = vld [vmem:[%s644 + $0xa8] sm:$0xff]
        %v667 = vld [vmem:[%s644 + $0xb0] sm:$0xff]
        %v668 = vld [vmem:[%s644 + $0xb8] sm:$0xff]
        %v669 = vld [vmem:[%s644 + $0xc0] sm:$0xff]
        %v670 = vld [vmem:[%s644 + $0xc8] sm:$0xff]
        %v671 = vld [vmem:[%s644 + $0xd0] sm:$0xff]
        %v672 = vld [vmem:[%s644 + $0xd8] sm:$0xff]
        %v673 = vld [vmem:[%s644 + $0xe0] sm:$0xff]
        %v674 = vld [vmem:[%s644 + $0xe8] sm:$0xff]
        %v675 = vld [vmem:[%s644 + $0xf0] sm:$0xff]
        %v676 = vld [vmem:[%s644 + $0xf8] sm:$0xff]
        %v677 = vld [vmem:[%s644 + $0x100] sm:$0xff]
        %v678 = vld [vmem:[%s644 + $0x108] sm:$0xff]
        %v679 = vld [vmem:[%s644 + $0x110] sm:$0xff]
        %v680 = vld [vmem:[%s644 + $0x118] sm:$0xff]
        %v681 = vld [vmem:[%s644 + $0x120] sm:$0xff]
        %v682 = vld [vmem:[%s644 + $0x128] sm:$0xff]
        %v683 = vld [vmem:[%s644 + $0x130] sm:$0xff]
        %v684 = vld [vmem:[%s644 + $0x138] sm:$0xff]
        %685 = vmatprep.subr.mxu0 0.0
        %686 = vmatpush1.msra.mxu0 %v660
        %687 = vmatprep.subr.mxu0 0.0
        %688 = vmatpush1.msra.mxu0 %v659
        %689 = vmatprep.subr.mxu0 0.0
        %690 = vmatpush1.msra.mxu0 %v658
        %691 = vmatprep.subr.mxu0 0.0
        %692 = vmatpush1.msra.mxu0 %v657
        %693 = vmatprep.subr.mxu0 0.0
        %694 = vmatpush1.msra.mxu0 %v656
        %695 = vmatprep.subr.mxu0 0.0
        %696 = vmatpush1.msra.mxu0 %v655
        %697 = vmatprep.subr.mxu0 0.0
        %698 = vmatpush1.msra.mxu0 %v654
        %699 = vmatprep.subr.mxu0 0.0
        %700 = vmatpush1.msra.mxu0 %v653
        %701 = vmatprep.subr.mxu0 0.0
        %702 = vmatpush1.msra.mxu0 %v652
        %703 = vmatprep.subr.mxu0 0.0
        %704 = vmatpush1.msra.mxu0 %v651
        %705 = vmatprep.subr.mxu0 0.0
        %706 = vmatpush1.msra.mxu0 %v650
        %707 = vmatprep.subr.mxu0 0.0
        %708 = vmatpush1.msra.mxu0 %v649
        %709 = vmatprep.subr.mxu0 0.0
        %710 = vmatpush1.msra.mxu0 %v648
        %711 = vmatprep.subr.mxu0 0.0
        %712 = vmatpush1.msra.mxu0 %v647
        %713 = vmatprep.subr.mxu0 0.0
        %714 = vmatpush1.msra.mxu0 %v646
        %715 = vmatprep.subr.mxu0 0.0
        %716 = vmatpush1.msra.mxu0 %v645
        %717 = vmatprep.subr.mxu0 0.0
        %718 = vmatpush2.msra.mxu0 %v676
        %719 = vmatprep.subr.mxu0 0.0
        %720 = vmatpush2.msra.mxu0 %v675
        %721 = vmatprep.subr.mxu0 0.0
        %722 = vmatpush2.msra.mxu0 %v674
        %723 = vmatprep.subr.mxu0 0.0
        %724 = vmatpush2.msra.mxu0 %v673
        %725 = vmatprep.subr.mxu0 0.0
        %726 = vmatpush2.msra.mxu0 %v672
        %727 = vmatprep.subr.mxu0 0.0
        %728 = vmatpush2.msra.mxu0 %v671
        %729 = vmatprep.subr.mxu0 0.0
        %730 = vmatpush2.msra.mxu0 %v670
        %731 = vmatprep.subr.mxu0 0.0
        %732 = vmatpush2.msra.mxu0 %v669
        %733 = vmatprep.subr.mxu0 0.0
        %734 = vmatpush2.msra.mxu0 %v668
        %735 = vmatprep.subr.mxu0 0.0
        %736 = vmatpush2.msra.mxu0 %v667
        %737 = vmatprep.subr.mxu0 0.0
        %738 = vmatpush2.msra.mxu0 %v666
        %739 = vmatprep.subr.mxu0 0.0
        %740 = vmatpush2.msra.mxu0 %v665
        %741 = vmatprep.subr.mxu0 0.0
        %742 = vmatpush2.msra.mxu0 %v664
        %743 = vmatprep.subr.mxu0 0.0
        %744 = vmatpush2.msra.mxu0 %v663
        %745 = vmatprep.subr.mxu0 0.0
        %746 = vmatpush2.msra.mxu0 %v662
        %747 = vmatprep.subr.mxu0 0.0
        %748 = vmatpush2.msra.mxu0 %v661
        %749 = vmatprep.mubr.f32.mxu0 %v442
        %750 = vmatmul.mubr.f32.gmra.mxu0 %v441
        %v751 = vpop.f32.mrf.mxu0
        %v752 = vadd.f32 0.0, %v751
        %v753 = vpop.f32.mrf.mxu0
        %754 = vmatprep.mubr.f32.mxu0 %v445
        %755 = vmatmul.mubr.f32.gmra.mxu0 %v444
        %v756 = vpop.f32.mrf.mxu0
        %v757 = vadd.f32 0.0, %v756
        %v758 = vpop.f32.mrf.mxu0
        %759 = vdwg.mxu0
        %760 = vmatprep.subr.mxu0 0.0
        %761 = vmatpush1.msra.mxu0 0.0
        %762 = vmatprep.subr.mxu0 0.0
        %763 = vmatpush1.msra.mxu0 0.0
        %764 = vmatprep.subr.mxu0 0.0
        %765 = vmatpush1.msra.mxu0 0.0
        %766 = vmatprep.subr.mxu0 0.0
        %767 = vmatpush1.msra.mxu0 0.0
        %768 = vmatprep.subr.mxu0 0.0
        %769 = vmatpush1.msra.mxu0 0.0
        %770 = vmatprep.subr.mxu0 0.0
        %771 = vmatpush1.msra.mxu0 0.0
        %772 = vmatprep.subr.mxu0 0.0
        %773 = vmatpush1.msra.mxu0 0.0
        %774 = vmatprep.subr.mxu0 0.0
        %775 = vmatpush1.msra.mxu0 0.0
        %776 = vmatprep.subr.mxu0 0.0
        %777 = vmatpush1.msra.mxu0 %v684
        %778 = vmatprep.subr.mxu0 0.0
        %779 = vmatpush1.msra.mxu0 %v683
        %780 = vmatprep.subr.mxu0 0.0
        %781 = vmatpush1.msra.mxu0 %v682
        %782 = vmatprep.subr.mxu0 0.0
        %783 = vmatpush1.msra.mxu0 %v681
        %784 = vmatprep.subr.mxu0 0.0
        %785 = vmatpush1.msra.mxu0 %v680
        %786 = vmatprep.subr.mxu0 0.0
        %787 = vmatpush1.msra.mxu0 %v679
        %788 = vmatprep.subr.mxu0 0.0
        %789 = vmatpush1.msra.mxu0 %v678
        %790 = vmatprep.subr.mxu0 0.0
        %791 = vmatpush1.msra.mxu0 %v677
        %792 = vmatprep.subr.mxu0 0.0
        %793 = vmatpush2.msra.mxu0 0.0
        %794 = vmatprep.subr.mxu0 0.0
        %795 = vmatpush2.msra.mxu0 0.0
        %796 = vmatprep.subr.mxu0 0.0
        %797 = vmatpush2.msra.mxu0 0.0
        %798 = vmatprep.subr.mxu0 0.0
        %799 = vmatpush2.msra.mxu0 0.0
        %800 = vmatprep.subr.mxu0 0.0
        %801 = vmatpush2.msra.mxu0 0.0
        %802 = vmatprep.subr.mxu0 0.0
        %803 = vmatpush2.msra.mxu0 0.0
        %804 = vmatprep.subr.mxu0 0.0
        %805 = vmatpush2.msra.mxu0 0.0
        %806 = vmatprep.subr.mxu0 0.0
        %807 = vmatpush2.msra.mxu0 0.0
        %808 = vmatprep.subr.mxu0 0.0
        %809 = vmatpush2.msra.mxu0 0.0
        %810 = vmatprep.subr.mxu0 0.0
        %811 = vmatpush2.msra.mxu0 0.0
        %812 = vmatprep.subr.mxu0 0.0
        %813 = vmatpush2.msra.mxu0 0.0
        %814 = vmatprep.subr.mxu0 0.0
        %815 = vmatpush2.msra.mxu0 0.0
        %816 = vmatprep.subr.mxu0 0.0
        %817 = vmatpush2.msra.mxu0 0.0
        %818 = vmatprep.subr.mxu0 0.0
        %819 = vmatpush2.msra.mxu0 0.0
        %820 = vmatprep.subr.mxu0 0.0
        %821 = vmatpush2.msra.mxu0 0.0
        %822 = vmatprep.subr.mxu0 0.0
        %823 = vmatpush2.msra.mxu0 0.0
        %824 = vmatprep.mubr.f32.mxu0 0.0
        %825 = vmatmul.mubr.f32.gmra.mxu0 %v489
        %v826 = vpop.f32.mrf.mxu0
        %v827 = vadd.f32 %v752, %v826
        %v828 = vpop.f32.mrf.mxu0
        %829 = vmatprep.mubr.f32.mxu0 0.0
        %830 = vmatmul.mubr.f32.gmra.mxu0 %v492
        %v831 = vpop.f32.mrf.mxu0
        %v832 = vadd.f32 %v757, %v831
        %v833 = vpop.f32.mrf.mxu0
        %834 = vdwg.mxu0
        %v835 = vmax.f32 %v636, %v827
        %v836 = vmax.f32 %v641, %v832
        %v837 = vld [vmem:[%s2] sm:$0x1]
        %v839 = vlaneseq
        %v840 = vshrl.u32 %v839, 7
        %v841 = vsub.s32 0, %v840
        %v842 = vrot.slane %v837, %v841
        %v844 = vadd.f32 %v835, %v842
        %v845 = vadd.f32 %v836, %v842
        %v846 = vmax.f32 %v844, 0.0
        %v847 = vmax.f32 %v845, 0.0
        %vm848 = vcmask 293888
        %849 = vst.msk [vmem:[#allocation3] sm:$0xff] %vm848, %v846
        %vm850 = vcmask 289792
        %851 = vst.msk [vmem:[#allocation3 + $0x8] sm:$0xf] %vm850, %v847
        %v852 = vld [vmem:[#allocation3] ss:$2 sm:$0x3f]
        %s853 = scalar_lea.vmem [#allocation3], 1
        %v854 = vld [vmem:[%s853] ss:$2 sm:$0x3f]
        %v855 = vmax.f32 %v852, %v854
        %vm856 = vcmask 46080
        %857 = vst.msk [vmem:[%s205] sm:$0x3f] %vm856, %v855
        %859 = vrot.lane.b32.xlu0 %v855, 122
        %v860 = vpop.permute.xlu0 %859
        %s862 = scalar_lea.vmem %s205, 8
        %863 = vst.msk [vmem:[%s862] sm:$0x3f] %vm856, %v860
        %864 = vrot.lane.b32.xlu0 %v855, 116
        %v865 = vpop.permute.xlu0 %864
        %s867 = scalar_lea.vmem %s205, 16
        %868 = vst.msk [vmem:[%s867] sm:$0x3f] %vm856, %v865
        %869 = vrot.lane.b32.xlu0 %v855, 110
        %v870 = vpop.permute.xlu0 %869
        %s872 = scalar_lea.vmem %s205, 24
        %873 = vst.msk [vmem:[%s872] sm:$0x3f] %vm856, %v870
        %874 = vrot.lane.b32.xlu0 %v855, 104
        %v875 = vpop.permute.xlu0 %874
        %s877 = scalar_lea.vmem %s205, 32
        %878 = vst.msk [vmem:[%s877] sm:$0x3f] %vm856, %v875
        %879 = vrot.lane.b32.xlu0 %v855, 98
        %v880 = vpop.permute.xlu0 %879
        %s882 = scalar_lea.vmem %s205, 40
        %883 = vst.msk [vmem:[%s882] sm:$0x3f] %vm856, %v880
        %p884 = scmp.lt.s32.totalorder %s18, 1
        %s885 = scalar_select %p884, %s18, 1
        %s886 = smul.addr %s885, 6
        %s887 = smul.addr %s886, 8
        %s888 = scalar_lea.vmem %s3, %s887
        // Predicated region
        $region41: #{a_call__.1} parent=31 // pred_check
          %p889 = pneg %p104
        $region42: #{a_call__.1} parent=31 // pred_check_branch
          %891 = sbr.rel (%p889) target = $region44
        $region43: #{a_call__.1} parent=31 // pred_region
          _
        $region44: #{a_call__.1} parent=31 // pred_fallthru
          _
      $region32: #{a_call__.1} parent=5 // pred_fallthru
        _
      %p892 = scmp.le.s32.totalorder 2, %s13
      // Predicated region
      $region45: #{a_call__.1} parent=5 // pred_check
        %p893 = pneg %p892
      $region46: #{a_call__.1} parent=5 // pred_check_branch
        %895 = sbr.rel (%p893) target = $region48
      $region47: #{a_call__.1} parent=5 // pred_region
        %s896 = ssub.s32 %s13, 2
        // Predicated region
        $region49: #{a_call__.1} parent=47 // pred_check
          %p897 = pneg %p110
        $region50: #{a_call__.1} parent=47 // pred_check_branch
          %899 = sbr.rel (%p897) target = $region52
        $region51: #{a_call__.1} parent=47 // pred_region
          %p900 = scmp.lt.s32.totalorder %s19, 1
          %s901 = scalar_select %p900, %s19, 1
          %s902 = smul.addr %s901, 6
          %s903 = smul.addr %s902, 8
          %s904 = scalar_lea.vmem %s3, %s903
        $region52: #{a_call__.1} parent=47 // pred_fallthru
          _
      $region48: #{a_call__.1} parent=5 // pred_fallthru
        _
    $region6: #{a_call__.1} parent=1 // loop_footer
      %s17 = sadd.s32 1, %s13
    $region7: #{a_call__.1} parent=1 // loop_footer_branch
      %12 = sbr.rel target = $region3
    $region8: #{a_call__.1} parent=1 // loop_exit
      _
    %905 = vsyncpa [#allocation5], 1
    %s906 = scalar_lea.sflag [#allocation5], 1
    %907 = vsyncpa %s906, 1
    %908 = vsyncpa [#allocation7], 1

</llo_original>
